<compile_context>
chip_gen: v5e
topology: v5e:2x2
jax: 0.10.0
libtpu: 0.0.40
codegen_flags: <defaults>
</compile_context>

<pallas_src>
import math

import jax
import jax.numpy as jnp
from jax import lax
from jax.experimental import pallas as pl
from jax.experimental.pallas import tpu as pltpu

_MIB = 1024 * 1024


# ------------------------------ helpers -------------------------------------

def _round_up(x, m):
    return ((x + m - 1) // m) * m


def _device_kind():
    try:
        return jax.devices()[0].device_kind.lower()
    except Exception:
        return ""


def _hw_config():
    """Generation-aware hardware parameters (VMEM, TC count, MXU granule)."""
    kind = _device_kind()
    is_v5e = ("v5 lite" in kind) or ("v5e" in kind) or ("v5litepod" in kind)
    is_v7 = ("v7" in kind) or ("tpu7" in kind)

    # 2 TensorCores per chip (megacore) only on v4 / v5p / v7x.
    if is_v5e or ("v6" in kind):
        num_tc = 1
    elif ("v4" in kind) or ("v5p" in kind) or is_v7 or \
            ("v5" in kind and "lite" not in kind):
        num_tc = 2
    else:
        num_tc = 1

    vmem_cap = None
    try:
        info = pltpu.get_tpu_info()
        vmem_cap = int(getattr(info, "vmem_capacity_bytes", 0)) or None
    except Exception:
        vmem_cap = None
    if vmem_cap is None:
        vmem_cap = 64 * _MIB if is_v7 else 128 * _MIB

    return dict(
        num_tc=num_tc,
        mxu_granule=128 if is_v5e else 256,
        vmem_budget=int(0.70 * vmem_cap),        # tile working-set ceiling
        vmem_limit_cap=int(0.78 * vmem_cap),     # ceiling for vmem_limit_bytes
        resident_weight_limit=int(0.45 * vmem_cap),
    )


def _single_buffer_mode():
    """pl.Buffered(1) for grid-invariant blocks, or None if unsupported."""
    try:
        mode = pl.Buffered(1)
        pl.BlockSpec((8, 128), lambda i: (0, 0), pipeline_mode=mode)  # probe
        return mode
    except Exception:
        return None


def _fit_tile(requested, dim, sublane, fits):
    """Largest tile <= requested that satisfies `fits`, aligned to `sublane`
    (or exactly `dim`, which is always a legal block extent)."""
    t = max(sublane, min(int(requested), max(int(dim), sublane)))
    while t > sublane and not fits(t):
        t = max(sublane, t // 2)
    if t >= dim:
        return int(dim)
    return max(sublane, (t // sublane) * sublane)


def _clamp_tile(requested, dim, granule):
    """Tile for a 128-lane / MXU dim: either the full dim or a granule multiple."""
    t = min(int(requested), int(dim))
    if t < dim:
        t = max(granule, (t // granule) * granule)
    return t


# ------------------------------ kernels -------------------------------------

def _linear_resident_kernel(x_ref, wt_ref, o_ref):
    """Path A: (tm, K) x (K, N) with the whole (K, N) weight resident in VMEM."""
    o_ref[...] = jnp.dot(
        x_ref[...], wt_ref[...], preferred_element_type=jnp.float32
    ).astype(o_ref.dtype)


def _linear_tiled_kernel(x_ref, wt_ref, o_ref, acc_ref):
    """Path B: (tm, tk) x (tk, tn) tiles, reduced over the last grid axis."""
    @pl.when(pl.program_id(2) == 0)
    def _():
        acc_ref[...] = jnp.zeros_like(acc_ref)

    acc_ref[...] += jnp.dot(
        x_ref[...], wt_ref[...], preferred_element_type=jnp.float32
    )

    @pl.when(pl.program_id(2) == pl.num_programs(2) - 1)
    def _():
        o_ref[...] = acc_ref[...].astype(o_ref.dtype)


# ------------------------------ wrapper -------------------------------------

def projection_tokens_forward(x, weight, *, compute_dtype="auto",
                              tm=512, tn=1024, tk=256):
    """y = F.linear(x, weight) = x @ weight.T   (no bias).

    x:      (..., in_features)
    weight: (out_features, in_features)   (PyTorch layout)
    returns (..., out_features) in x's dtype.

    compute_dtype: "auto" (default) casts f32 inputs to bf16 for the MXU
    (f32 accumulation, f32 output); pass jnp.float32 / None for full-precision
    compute identical to the PyTorch module.
    """
    *lead, K = x.shape
    N, K_w = weight.shape
    assert K == K_w, "in_features mismatch"

    out_dtype = x.dtype
    if isinstance(compute_dtype, str) and compute_dtype == "auto":
        compute_dtype = jnp.bfloat16 if x.dtype == jnp.float32 else x.dtype
    if compute_dtype is None:
        compute_dtype = x.dtype
    compute_dtype = jnp.dtype(compute_dtype)

    M = int(math.prod(lead))
    x2d = x.reshape(M, K).astype(compute_dtype)
    # One-time weight transpose + cast in HBM (weight-sized, amortised over
    # the whole activation stream): gives the MXU a (K, N) RHS so no per-step
    # tile transpose is needed inside the kernel.
    w_t = weight.astype(compute_dtype).T                         # (K, N)

    cb = compute_dtype.itemsize
    ob = jnp.dtype(out_dtype).itemsize
    sublane = max(8, 32 // cb)    # 8 for f32, 16 for bf16, 32 for int8/fp8

    # Lane-dense output: if out_features < 128, pad the weight's N dim only
    # (cheap) so stores are full-lane vst instead of masked partial stores.
    n_eff = N if N >= 128 else 128
    if n_eff != N:
        w_t = jnp.pad(w_t, ((0, 0), (0, n_eff - N)))

    hw = _hw_config()
    budget = hw["vmem_budget"]
    limit_cap = hw["vmem_limit_cap"]
    gran = hw["mxu_granule"]

    cost = pl.CostEstimate(
        flops=2 * M * N * K,
        bytes_accessed=M * K * cb + N * K * cb + M * N * ob,
        transcendentals=0,
    )

    buffered_one = _single_buffer_mode()
    w_bufs = 1 if buffered_one is not None else 2
    w_vmem = w_bufs * K * n_eff * cb

    def fp_resident(t):
        # double-buffered x tile + resident weight + double-buffered out tile
        return 2 * t * K * cb + w_vmem + 2 * t * n_eff * ob

    # ---- M tile: large; split across TensorCores only on 2-TC chips --------
    tm_req = int(tm)
    if hw["num_tc"] > 1 and M > sublane:
        tm_req = min(tm_req, -(-M // hw["num_tc"]))
    tm_a = _fit_tile(tm_req, M, sublane, lambda t: fp_resident(t) <= budget)

    use_resident = (w_vmem <= hw["resident_weight_limit"]
                    and fp_resident(tm_a) <= budget)

    if use_resident:
        # -------------- Path A: weight resident in VMEM ---------------------
        vmem_limit = int(min(limit_cap,
                             max(fp_resident(tm_a) * 5 // 4, 32 * _MIB)))

        def call_path_a(w_spec):
            return pl.pallas_call(
                _linear_resident_kernel,
                out_shape=jax.ShapeDtypeStruct((M, n_eff), out_dtype),
                grid_spec=pltpu.PrefetchScalarGridSpec(
                    num_scalar_prefetch=0,
                    grid=(pl.cdiv(M, tm_a),),
                    in_specs=[pl.BlockSpec((tm_a, K), lambda i: (i, 0)),
                              w_spec],
                    out_specs=pl.BlockSpec((tm_a, n_eff), lambda i: (i, 0)),
                ),
                compiler_params=pltpu.CompilerParams(
                    dimension_semantics=("parallel",),
                    vmem_limit_bytes=vmem_limit,
                ),
                cost_estimate=cost,
            )(x2d, w_t)

        plain_w_spec = pl.BlockSpec((K, n_eff), lambda i: (0, 0))
        if buffered_one is not None:
            try:
                # Constant index_map -> fetched once; single buffer halves its
                # VMEM footprint (biggest win on v7x's 64 MiB VMEM).
                out2d = call_path_a(
                    pl.BlockSpec((K, n_eff), lambda i: (0, 0),
                                 pipeline_mode=buffered_one))
            except Exception:
                out2d = call_path_a(plain_w_spec)
        else:
            out2d = call_path_a(plain_w_spec)
    else:
        # -------------- Path B: 3-D tiled matmul ----------------------------
        # Small tk (contributes nothing to reuse), large tm/tn sized to the
        # generation's VMEM budget -> minimal HBM read amplification.
        if budget >= 80 * _MIB:
            tm_req = max(tm_req, 1024)

        tn_b = _clamp_tile(int(tn), n_eff, gran)
        tk_b = _clamp_tile(int(tk), K, gran)

        def fp_tiled(t):
            return (2 * t * tk_b * cb + 2 * tk_b * tn_b * cb
                    + 2 * t * tn_b * ob + t * tn_b * 4)

        tm_b = _fit_tile(tm_req, M, sublane, lambda t: fp_tiled(t) <= budget)

        # Only K needs padding (reduction correctness); ragged M / N blocks
        # are masked by Pallas -> no wrapper-side pad/slice on activations.
        k_pad = _round_up(K, tk_b)
        x_b = x2d if k_pad == K else jnp.pad(x2d, ((0, 0), (0, k_pad - K)))
        w_b = w_t if k_pad == K else jnp.pad(w_t, ((0, k_pad - K), (0, 0)))

        vmem_limit = int(min(limit_cap,
                             max(fp_tiled(tm_b) * 5 // 4, 32 * _MIB)))

        out2d = pl.pallas_call(
            _linear_tiled_kernel,
            out_shape=jax.ShapeDtypeStruct((M, n_eff), out_dtype),
            grid_spec=pltpu.PrefetchScalarGridSpec(
                num_scalar_prefetch=0,
                grid=(pl.cdiv(M, tm_b), pl.cdiv(n_eff, tn_b), k_pad // tk_b),
                in_specs=[
                    pl.BlockSpec((tm_b, tk_b), lambda i, j, k: (i, k)),
                    pl.BlockSpec((tk_b, tn_b), lambda i, j, k: (k, j)),
                ],
                out_specs=pl.BlockSpec((tm_b, tn_b), lambda i, j, k: (i, j)),
                scratch_shapes=[pltpu.VMEM((tm_b, tn_b), jnp.float32)],
            ),
            compiler_params=pltpu.CompilerParams(
                dimension_semantics=("parallel", "parallel", "arbitrary"),
                vmem_limit_bytes=vmem_limit,
            ),
            cost_estimate=cost,
        )(x_b, w_b)

    if n_eff != N:
        out2d = out2d[:, :N]
    return out2d.reshape(*lead, N)


def init_projection_tokens_params(key, in_features, out_features,
                                  dtype=jnp.float32):
    """Matches reset_parameters(): weight ~ N(0, 1/sqrt(out_features)), (out, in)."""
    std = 1.0 / math.sqrt(out_features)
    return std * jax.random.normal(key, (out_features, in_features), dtype)


if __name__ == "__main__":
    # Small shapes consistent with the module: (batch, seq, in_features).
    batch, seq = 2, 64
    in_features, out_features = 256, 128

    key = jax.random.PRNGKey(0)
    k_w, k_x = jax.random.split(key)

    weight = init_projection_tokens_params(k_w, in_features, out_features)
    x = jax.random.normal(k_x, (batch, seq, in_features), jnp.float32)

    # Default path: bf16 MXU compute, f32 accumulation, f32 output.
    y = projection_tokens_forward(x, weight)
    y = jax.block_until_ready(y)
    assert y.shape == (batch, seq, out_features)
    assert y.dtype == x.dtype

    ref_bf16 = jnp.einsum(
        "bsk,nk->bsn",
        x.astype(jnp.bfloat16), weight.astype(jnp.bfloat16),
        preferred_element_type=jnp.float32)
    assert jnp.allclose(y, ref_bf16, atol=1e-2, rtol=1e-2)

    # Full-precision path (module-exact f32 semantics).
    y32 = projection_tokens_forward(x, weight, compute_dtype=jnp.float32)
    y32 = jax.block_until_ready(y32)
    ref32 = jnp.einsum("bsk,nk->bsn", x, weight,
                       precision=lax.Precision.HIGHEST)
    assert jnp.allclose(y32, ref32, atol=1e-2, rtol=1e-2)

    print("KERNEL_OK")
</pallas_src>

<mosaic_0001>
module attributes {stable_mosaic.version = 11 : i64} {
  func.func @_linear_resident_kernel(%arg0: i32, %arg1: memref<128x256xbf16, #tpu.memory_space<vmem>>, %arg2: memref<256x128xbf16, #tpu.memory_space<vmem>>, %arg3: memref<128x128xf32, #tpu.memory_space<vmem>>) attributes {dimension_semantics = [#tpu.dimension_semantics<parallel>], iteration_bounds = array<i64: 1>, scalar_prefetch = 0 : i64, scratch_operands = 0 : i64, tpu.core_type = #tpu.core_type<tc>, window_params = [{transform_indices = @transform_0, window_bounds = array<i64: 128, 256>}, {pipeline_mode = #tpu.pipeline_mode<synchronous>, transform_indices = @transform_1, window_bounds = array<i64: 256, 128>}, {transform_indices = @transform_2, window_bounds = array<i64: 128, 128>}]} {
    %c0 = arith.constant 0 : index
    %c0_0 = arith.constant 0 : index
    %0 = vector.load %arg1[%c0, %c0_0] : memref<128x256xbf16, #tpu.memory_space<vmem>>, vector<128x256xbf16>
    %c0_1 = arith.constant 0 : index
    %c0_2 = arith.constant 0 : index
    %1 = vector.load %arg2[%c0_1, %c0_2] : memref<256x128xbf16, #tpu.memory_space<vmem>>, vector<256x128xbf16>
    %cst = arith.constant dense<0.000000e+00> : vector<128x128xf32>
    %2 = tpu.matmul %0, %1, %cst {dimension_numbers = #tpu.dot_dimension_numbers<[1], [0], [0], [1], [0, 0, 1, 1], [], []>} : vector<128x256xbf16>, vector<256x128xbf16>, vector<128x128xf32> -> vector<128x128xf32>
    %c0_3 = arith.constant 0 : index
    %c0_4 = arith.constant 0 : index
    %3 = vector.load %arg3[%c0_3, %c0_4] : memref<128x128xf32, #tpu.memory_space<vmem>>, vector<128x128xf32>
    tpu.vector_store %arg3[%c0_3, %c0_4], %2 {strides = array<i32>} : memref<128x128xf32, #tpu.memory_space<vmem>>, vector<128x128xf32>,
    return
  }
  func.func @transform_0(%arg0: i32) -> (i32, i32) {
    %c0_i32 = arith.constant 0 : i32
    %c0_i32_0 = arith.constant 0 : i32
    return %arg0, %c0_i32 : i32, i32
  }
  func.func @transform_1(%arg0: i32) -> (i32, i32) {
    %c0_i32 = arith.constant 0 : i32
    %c0_i32_0 = arith.constant 0 : i32
    %c0_i32_1 = arith.constant 0 : i32
    return %c0_i32, %c0_i32_0 : i32, i32
  }
  func.func @transform_2(%arg0: i32) -> (i32, i32) {
    %c0_i32 = arith.constant 0 : i32
    %c0_i32_0 = arith.constant 0 : i32
    return %arg0, %c0_i32 : i32, i32
  }
}

module attributes {stable_mosaic.version = 11 : i64} {
  func.func @_linear_resident_kernel(%arg0: i32, %arg1: memref<128x256xbf16, #tpu.memory_space<vmem>>, %arg2: memref<256x128xbf16, #tpu.memory_space<vmem>>, %arg3: memref<128x128xf32, #tpu.memory_space<vmem>>) attributes {dimension_semantics = [#tpu.dimension_semantics<parallel>], iteration_bounds = array<i64: 1>, scalar_prefetch = 0 : i64, scratch_operands = 0 : i64, tpu.core_type = #tpu.core_type<tc>, window_params = [{transform_indices = @transform_0, window_bounds = array<i64: 128, 256>}, {pipeline_mode = #tpu.pipeline_mode<synchronous>, transform_indices = @transform_1, window_bounds = array<i64: 256, 128>}, {transform_indices = @transform_2, window_bounds = array<i64: 128, 128>}]} {
    %c0 = arith.constant 0 : index
    %c0_0 = arith.constant 0 : index
    %0 = vector.load %arg1[%c0, %c0_0] : memref<128x256xbf16, #tpu.memory_space<vmem>>, vector<128x256xbf16>
    %c0_1 = arith.constant 0 : index
    %c0_2 = arith.constant 0 : index
    %1 = vector.load %arg2[%c0_1, %c0_2] : memref<256x128xbf16, #tpu.memory_space<vmem>>, vector<256x128xbf16>
    %cst = arith.constant dense<0.000000e+00> : vector<128x128xf32>
    %2 = tpu.matmul %0, %1, %cst {dimension_numbers = #tpu.dot_dimension_numbers<[1], [0], [0], [1], [0, 0, 1, 1], [], []>} : vector<128x256xbf16>, vector<256x128xbf16>, vector<128x128xf32> -> vector<128x128xf32>
    %c0_3 = arith.constant 0 : index
    %c0_4 = arith.constant 0 : index
    %3 = vector.load %arg3[%c0_3, %c0_4] : memref<128x128xf32, #tpu.memory_space<vmem>>, vector<128x128xf32>
    tpu.vector_store %arg3[%c0_3, %c0_4], %2 {strides = array<i32>} : memref<128x128xf32, #tpu.memory_space<vmem>>, vector<128x128xf32>,
    return
  }
  func.func @transform_0(%arg0: i32) -> (i32, i32) {
    %c0_i32 = arith.constant 0 : i32
    %c0_i32_0 = arith.constant 0 : i32
    return %arg0, %c0_i32 : i32, i32
  }
  func.func @transform_1(%arg0: i32) -> (i32, i32) {
    %c0_i32 = arith.constant 0 : i32
    %c0_i32_0 = arith.constant 0 : i32
    %c0_i32_1 = arith.constant 0 : i32
    return %c0_i32, %c0_i32_0 : i32, i32
  }
  func.func @transform_2(%arg0: i32) -> (i32, i32) {
    %c0_i32 = arith.constant 0 : i32
    %c0_i32_0 = arith.constant 0 : i32
    return %arg0, %c0_i32 : i32, i32
  }
}

</mosaic_0001>

<llo_original>
// kernel: tpu_custom_call.1
$region0: #{tpu_custom_call.1}
  #allocation0 [shape = 'u32[]', space=smem, size = 0x4, offset = 0x4, fixed_abs, tag = 'smem constant byte address 0x4 - core index']
  #allocation1 [shape = 'u32[72,128]{1,0:T(1,128)}', space=vmem, size = 0x9000, scoped, tag = 'internal scratch']
  %s0 = inlined_call_operand.hbm [shape: bf16[128,256], index: 0, kind: input, shape index: {}]
  %s1 = inlined_call_operand.hbm [shape: bf16[256,128], index: 1, kind: input, shape index: {}]
  %s2 = inlined_call_operand.hbm [shape: f32[128,128], index: 2, kind: output, shape index: {}]
  %s3 = sld [smem:[#allocation0]]
  $region26: #{tpu_custom_call.1} parent=0
    _
  %s5 = ssub.s32 1, %s3
  %s6 = scalar_select 0, %s5, %s3
  $region1: #{tpu_custom_call.1} parent=0
    #allocation2 [shape = 'u8[65536]{0}', space=vmem, size = 0x10000, scoped, tag = 'input window, operand 0, single buffered']
    #allocation3 [shape = 's32[1]{0}', space=sflag, size = 0x4, scoped, tag = 'scoped memory for tpu_custom_call.1']
    #allocation4 [shape = 's32[1]{0}', space=sflag, size = 0x4, scoped, tag = 'scoped memory for tpu_custom_call.1']
    #allocation5 [shape = 'u8[65536]{0}', space=vmem, size = 0x10000, scoped, tag = 'input window, operand 1, single buffered']
    #allocation6 [shape = 's32[1]{0}', space=sflag, size = 0x4, scoped, tag = 'scoped memory for tpu_custom_call.1']
    #allocation7 [shape = 'u8[65536]{0}', space=vmem, size = 0x10000, scoped, tag = 'output window, operand 0, single buffered']
    %7 = vsyncpa [#allocation3], 0
    %8 = vsyncpa [#allocation6], 0
    %9 = vsyncpa [#allocation4], 0
    // Predicated region
    $region2: #{tpu_custom_call.1} parent=1 // pred_check
      _
    $region3: #{tpu_custom_call.1} parent=1 // pred_check_branch
      %11 = sbr.rel (0) target = $region5
    $region4: #{tpu_custom_call.1} parent=1 // pred_region
      %13 = vsyncadd [#allocation3], 0
      %s14 = sshll.u32 %s0, 4
      %s15 = int_to_ptr.hbm [resolvable:$true] %s14
      %s16 = sshll.u32 [#allocation2], 4
      %s17 = int_to_ptr.vmem [resolvable:$true] %s16
      %22 = dma.hbm_to_vmem [thread:$0]  %s15, 2048, %s17, [#allocation3], 128, 128, 8
    $region5: #{tpu_custom_call.1} parent=1 // pred_fallthru
      _
    // Predicated region
    $region6: #{tpu_custom_call.1} parent=1 // pred_check
      _
    $region7: #{tpu_custom_call.1} parent=1 // pred_check_branch
      %24 = sbr.rel (0) target = $region9
    $region8: #{tpu_custom_call.1} parent=1 // pred_region
      %26 = vsyncadd [#allocation6], 0
      %s27 = sshll.u32 %s1, 4
      %s28 = int_to_ptr.hbm [resolvable:$true] %s27
      %s29 = sshll.u32 [#allocation5], 4
      %s30 = int_to_ptr.vmem [resolvable:$true] %s29
      %35 = dma.hbm_to_vmem [thread:$0]  %s28, 2048, %s30, [#allocation6], 64, 64, 4
    $region9: #{tpu_custom_call.1} parent=1 // pred_fallthru
      _
    // Predicated region
    $region10: #{tpu_custom_call.1} parent=1 // pred_check
      _
    $region11: #{tpu_custom_call.1} parent=1 // pred_check_branch
      %37 = sbr.rel (0) target = $region13
    $region12: #{tpu_custom_call.1} parent=1 // pred_region
      %39 = dma.done [#allocation3], 2048
    $region13: #{tpu_custom_call.1} parent=1 // pred_fallthru
      _
    // Predicated region
    $region14: #{tpu_custom_call.1} parent=1 // pred_check
      _
    $region15: #{tpu_custom_call.1} parent=1 // pred_check_branch
      %41 = sbr.rel (0) target = $region17
    $region16: #{tpu_custom_call.1} parent=1 // pred_region
      %43 = dma.done [#allocation6], 2048
    $region17: #{tpu_custom_call.1} parent=1 // pred_fallthru
      _
    %v44 = vld [vmem:[#allocation2] sm:$0xff]
    %v45 = vld [vmem:[#allocation2 + $0x8] sm:$0xff]
    %v46 = vld [vmem:[#allocation2 + $0x10] sm:$0xff]
    %v47 = vld [vmem:[#allocation2 + $0x18] sm:$0xff]
    %v48 = vld [vmem:[#allocation2 + $0x20] sm:$0xff]
    %v49 = vld [vmem:[#allocation2 + $0x28] sm:$0xff]
    %v50 = vld [vmem:[#allocation2 + $0x30] sm:$0xff]
    %v51 = vld [vmem:[#allocation2 + $0x38] sm:$0xff]
    %v52 = vld [vmem:[#allocation2 + $0x40] sm:$0xff]
    %v53 = vld [vmem:[#allocation2 + $0x48] sm:$0xff]
    %v54 = vld [vmem:[#allocation2 + $0x50] sm:$0xff]
    %v55 = vld [vmem:[#allocation2 + $0x58] sm:$0xff]
    %v56 = vld [vmem:[#allocation2 + $0x60] sm:$0xff]
    %v57 = vld [vmem:[#allocation2 + $0x68] sm:$0xff]
    %v58 = vld [vmem:[#allocation2 + $0x70] sm:$0xff]
    %v59 = vld [vmem:[#allocation2 + $0x78] sm:$0xff]
    %v60 = vld [vmem:[#allocation5] sm:$0xf]
    %v61 = vld [vmem:[#allocation5 + $0x4] sm:$0xf]
    %v62 = vld [vmem:[#allocation5 + $0x8] sm:$0xf]
    %v63 = vld [vmem:[#allocation5 + $0xc] sm:$0xf]
    %v64 = vld [vmem:[#allocation5 + $0x10] sm:$0xf]
    %v65 = vld [vmem:[#allocation5 + $0x14] sm:$0xf]
    %v66 = vld [vmem:[#allocation5 + $0x18] sm:$0xf]
    %v67 = vld [vmem:[#allocation5 + $0x1c] sm:$0xf]
    %v68 = vld [vmem:[#allocation5 + $0x20] sm:$0xf]
    %v69 = vld [vmem:[#allocation5 + $0x24] sm:$0xf]
    %v70 = vld [vmem:[#allocation5 + $0x28] sm:$0xf]
    %v71 = vld [vmem:[#allocation5 + $0x2c] sm:$0xf]
    %v72 = vld [vmem:[#allocation5 + $0x30] sm:$0xf]
    %v73 = vld [vmem:[#allocation5 + $0x34] sm:$0xf]
    %v74 = vld [vmem:[#allocation5 + $0x38] sm:$0xf]
    %v75 = vld [vmem:[#allocation5 + $0x3c] sm:$0xf]
    %v76 = vld [vmem:[#allocation5 + $0x40] sm:$0xf]
    %v77 = vld [vmem:[#allocation5 + $0x44] sm:$0xf]
    %v78 = vld [vmem:[#allocation5 + $0x48] sm:$0xf]
    %v79 = vld [vmem:[#allocation5 + $0x4c] sm:$0xf]
    %v80 = vld [vmem:[#allocation5 + $0x50] sm:$0xf]
    %v81 = vld [vmem:[#allocation5 + $0x54] sm:$0xf]
    %v82 = vld [vmem:[#allocation5 + $0x58] sm:$0xf]
    %v83 = vld [vmem:[#allocation5 + $0x5c] sm:$0xf]
    %v84 = vld [vmem:[#allocation5 + $0x60] sm:$0xf]
    %v85 = vld [vmem:[#allocation5 + $0x64] sm:$0xf]
    %v86 = vld [vmem:[#allocation5 + $0x68] sm:$0xf]
    %v87 = vld [vmem:[#allocation5 + $0x6c] sm:$0xf]
    %v88 = vld [vmem:[#allocation5 + $0x70] sm:$0xf]
    %v89 = vld [vmem:[#allocation5 + $0x74] sm:$0xf]
    %v90 = vld [vmem:[#allocation5 + $0x78] sm:$0xf]
    %v91 = vld [vmem:[#allocation5 + $0x7c] sm:$0xf]
    %v108 = vunpack.c.l.b16 %v44
    %v109 = vunpack.c.h.b16 %v44
    %v110 = vunpack.c.l.b16 %v45
    %v111 = vunpack.c.h.b16 %v45
    %v112 = vunpack.c.l.b16 %v46
    %v113 = vunpack.c.h.b16 %v46
    %v114 = vunpack.c.l.b16 %v47
    %v115 = vunpack.c.h.b16 %v47
    %v116 = vunpack.c.l.b16 %v48
    %v117 = vunpack.c.h.b16 %v48
    %v118 = vunpack.c.l.b16 %v49
    %v119 = vunpack.c.h.b16 %v49
    %v120 = vunpack.c.l.b16 %v50
    %v121 = vunpack.c.h.b16 %v50
    %v122 = vunpack.c.l.b16 %v51
    %v123 = vunpack.c.h.b16 %v51
    %v124 = vunpack.c.l.b16 %v52
    %v125 = vunpack.c.h.b16 %v52
    %v126 = vunpack.c.l.b16 %v53
    %v127 = vunpack.c.h.b16 %v53
    %v128 = vunpack.c.l.b16 %v54
    %v129 = vunpack.c.h.b16 %v54
    %v130 = vunpack.c.l.b16 %v55
    %v131 = vunpack.c.h.b16 %v55
    %v132 = vunpack.c.l.b16 %v56
    %v133 = vunpack.c.h.b16 %v56
    %v134 = vunpack.c.l.b16 %v57
    %v135 = vunpack.c.h.b16 %v57
    %v136 = vunpack.c.l.b16 %v58
    %v137 = vunpack.c.h.b16 %v58
    %v138 = vunpack.c.l.b16 %v59
    %v139 = vunpack.c.h.b16 %v59
    %v140 = vpack.c.b16 %v110, %v108
    %v141 = vpack.c.b16 %v111, %v109
    %v142 = vpack.c.b16 %v114, %v112
    %v143 = vpack.c.b16 %v115, %v113
    %v144 = vpack.c.b16 %v118, %v116
    %v145 = vpack.c.b16 %v119, %v117
    %v146 = vpack.c.b16 %v122, %v120
    %v147 = vpack.c.b16 %v123, %v121
    %v148 = vpack.c.b16 %v126, %v124
    %v149 = vpack.c.b16 %v127, %v125
    %v150 = vpack.c.b16 %v130, %v128
    %v151 = vpack.c.b16 %v131, %v129
    %v152 = vpack.c.b16 %v134, %v132
    %v153 = vpack.c.b16 %v135, %v133
    %v154 = vpack.c.b16 %v138, %v136
    %v155 = vpack.c.b16 %v139, %v137
    %v204 = vunpack.c.l.b16 %v60
    %v205 = vunpack.c.l.b16 %v61
    %v206 = vunpack.c.l.b16 %v62
    %v207 = vunpack.c.l.b16 %v63
    %v208 = vunpack.c.l.b16 %v64
    %v209 = vunpack.c.l.b16 %v65
    %v210 = vunpack.c.l.b16 %v66
    %v211 = vunpack.c.l.b16 %v67
    %v212 = vunpack.c.l.b16 %v68
    %v213 = vunpack.c.l.b16 %v69
    %v214 = vunpack.c.l.b16 %v70
    %v215 = vunpack.c.l.b16 %v71
    %v216 = vunpack.c.l.b16 %v72
    %v217 = vunpack.c.l.b16 %v73
    %v218 = vunpack.c.l.b16 %v74
    %v219 = vunpack.c.l.b16 %v75
    %v220 = vunpack.c.l.b16 %v76
    %v221 = vunpack.c.l.b16 %v77
    %v222 = vunpack.c.l.b16 %v78
    %v223 = vunpack.c.l.b16 %v79
    %v224 = vunpack.c.l.b16 %v80
    %v225 = vunpack.c.l.b16 %v81
    %v226 = vunpack.c.l.b16 %v82
    %v227 = vunpack.c.l.b16 %v83
    %v228 = vunpack.c.l.b16 %v84
    %v229 = vunpack.c.l.b16 %v85
    %v230 = vunpack.c.l.b16 %v86
    %v231 = vunpack.c.l.b16 %v87
    %v232 = vunpack.c.l.b16 %v88
    %v233 = vunpack.c.l.b16 %v89
    %v234 = vunpack.c.l.b16 %v90
    %v235 = vunpack.c.l.b16 %v91
    %v236 = vpack.c.b16 %v205, %v204
    %v237 = vpack.c.b16 %v207, %v206
    %v238 = vpack.c.b16 %v209, %v208
    %v239 = vpack.c.b16 %v211, %v210
    %v240 = vpack.c.b16 %v213, %v212
    %v241 = vpack.c.b16 %v215, %v214
    %v242 = vpack.c.b16 %v217, %v216
    %v243 = vpack.c.b16 %v219, %v218
    %v244 = vpack.c.b16 %v221, %v220
    %v245 = vpack.c.b16 %v223, %v222
    %v246 = vpack.c.b16 %v225, %v224
    %v247 = vpack.c.b16 %v227, %v226
    %v248 = vpack.c.b16 %v229, %v228
    %v249 = vpack.c.b16 %v231, %v230
    %v250 = vpack.c.b16 %v233, %v232
    %v251 = vpack.c.b16 %v235, %v234
    %268 = vmatpush.bf16.msra.mxu0 %v243
    %269 = vmatpush.bf16.msra.mxu0 %v242
    %270 = vmatpush.bf16.msra.mxu0 %v241
    %271 = vmatpush.bf16.msra.mxu0 %v240
    %272 = vmatpush.bf16.msra.mxu0 %v239
    %273 = vmatpush.bf16.msra.mxu0 %v238
    %274 = vmatpush.bf16.msra.mxu0 %v237
    %275 = vmatpush.bf16.msra.mxu0 %v236
    %276 = vmatmul.bf16.gmra.mxu0 %v140
    %v277 = vpop.f32.mrf.mxu0
    %v278 = vadd.f32 0.0, %v277
    %v279 = vpop.f32.mrf.mxu0
    %v280 = vadd.f32 0.0, %v279
    %281 = vmatmul.bf16.gmra.mxu0 %v142
    %v282 = vpop.f32.mrf.mxu0
    %v283 = vadd.f32 0.0, %v282
    %v284 = vpop.f32.mrf.mxu0
    %v285 = vadd.f32 0.0, %v284
    %286 = vmatmul.bf16.gmra.mxu0 %v144
    %v287 = vpop.f32.mrf.mxu0
    %v288 = vadd.f32 0.0, %v287
    %v289 = vpop.f32.mrf.mxu0
    %v290 = vadd.f32 0.0, %v289
    %291 = vmatmul.bf16.gmra.mxu0 %v146
    %v292 = vpop.f32.mrf.mxu0
    %v293 = vadd.f32 0.0, %v292
    %v294 = vpop.f32.mrf.mxu0
    %v295 = vadd.f32 0.0, %v294
    %296 = vmatmul.bf16.gmra.mxu0 %v148
    %v297 = vpop.f32.mrf.mxu0
    %v298 = vadd.f32 0.0, %v297
    %v299 = vpop.f32.mrf.mxu0
    %v300 = vadd.f32 0.0, %v299
    %301 = vmatmul.bf16.gmra.mxu0 %v150
    %v302 = vpop.f32.mrf.mxu0
    %v303 = vadd.f32 0.0, %v302
    %v304 = vpop.f32.mrf.mxu0
    %v305 = vadd.f32 0.0, %v304
    %306 = vmatmul.bf16.gmra.mxu0 %v152
    %v307 = vpop.f32.mrf.mxu0
    %v308 = vadd.f32 0.0, %v307
    %v309 = vpop.f32.mrf.mxu0
    %v310 = vadd.f32 0.0, %v309
    %311 = vmatmul.bf16.gmra.mxu0 %v154
    %v312 = vpop.f32.mrf.mxu0
    %v313 = vadd.f32 0.0, %v312
    %v314 = vpop.f32.mrf.mxu0
    %v315 = vadd.f32 0.0, %v314
    %316 = vdwg.mxu0
    %317 = vmatpush.bf16.msra.mxu0 %v251
    %318 = vmatpush.bf16.msra.mxu0 %v250
    %319 = vmatpush.bf16.msra.mxu0 %v249
    %320 = vmatpush.bf16.msra.mxu0 %v248
    %321 = vmatpush.bf16.msra.mxu0 %v247
    %322 = vmatpush.bf16.msra.mxu0 %v246
    %323 = vmatpush.bf16.msra.mxu0 %v245
    %324 = vmatpush.bf16.msra.mxu0 %v244
    %325 = vmatmul.bf16.gmra.mxu0 %v141
    %v326 = vpop.f32.mrf.mxu0
    %v327 = vadd.f32 %v278, %v326
    %v328 = vpop.f32.mrf.mxu0
    %v329 = vadd.f32 %v280, %v328
    %330 = vmatmul.bf16.gmra.mxu0 %v143
    %v331 = vpop.f32.mrf.mxu0
    %v332 = vadd.f32 %v283, %v331
    %v333 = vpop.f32.mrf.mxu0
    %v334 = vadd.f32 %v285, %v333
    %335 = vmatmul.bf16.gmra.mxu0 %v145
    %v336 = vpop.f32.mrf.mxu0
    %v337 = vadd.f32 %v288, %v336
    %v338 = vpop.f32.mrf.mxu0
    %v339 = vadd.f32 %v290, %v338
    %340 = vmatmul.bf16.gmra.mxu0 %v147
    %v341 = vpop.f32.mrf.mxu0
    %v342 = vadd.f32 %v293, %v341
    %v343 = vpop.f32.mrf.mxu0
    %v344 = vadd.f32 %v295, %v343
    %345 = vmatmul.bf16.gmra.mxu0 %v149
    %v346 = vpop.f32.mrf.mxu0
    %v347 = vadd.f32 %v298, %v346
    %v348 = vpop.f32.mrf.mxu0
    %v349 = vadd.f32 %v300, %v348
    %350 = vmatmul.bf16.gmra.mxu0 %v151
    %v351 = vpop.f32.mrf.mxu0
    %v352 = vadd.f32 %v303, %v351
    %v353 = vpop.f32.mrf.mxu0
    %v354 = vadd.f32 %v305, %v353
    %355 = vmatmul.bf16.gmra.mxu0 %v153
    %v356 = vpop.f32.mrf.mxu0
    %v357 = vadd.f32 %v308, %v356
    %v358 = vpop.f32.mrf.mxu0
    %v359 = vadd.f32 %v310, %v358
    %360 = vmatmul.bf16.gmra.mxu0 %v155
    %v361 = vpop.f32.mrf.mxu0
    %v362 = vadd.f32 %v313, %v361
    %v363 = vpop.f32.mrf.mxu0
    %v364 = vadd.f32 %v315, %v363
    %365 = vdwg.mxu0
    %366 = vst [vmem:[#allocation7] sm:$0xff] %v327
    %367 = vst [vmem:[#allocation7 + $0x8] sm:$0xff] %v329
    %368 = vst [vmem:[#allocation7 + $0x10] sm:$0xff] %v332
    %369 = vst [vmem:[#allocation7 + $0x18] sm:$0xff] %v334
    %370 = vst [vmem:[#allocation7 + $0x20] sm:$0xff] %v337
    %371 = vst [vmem:[#allocation7 + $0x28] sm:$0xff] %v339
    %372 = vst [vmem:[#allocation7 + $0x30] sm:$0xff] %v342
    %373 = vst [vmem:[#allocation7 + $0x38] sm:$0xff] %v344
    %374 = vst [vmem:[#allocation7 + $0x40] sm:$0xff] %v347
    %375 = vst [vmem:[#allocation7 + $0x48] sm:$0xff] %v349
    %376 = vst [vmem:[#allocation7 + $0x50] sm:$0xff] %v352
    %377 = vst [vmem:[#allocation7 + $0x58] sm:$0xff] %v354
    %378 = vst [vmem:[#allocation7 + $0x60] sm:$0xff] %v357
    %379 = vst [vmem:[#allocation7 + $0x68] sm:$0xff] %v359
    %380 = vst [vmem:[#allocation7 + $0x70] sm:$0xff] %v362
    %381 = vst [vmem:[#allocation7 + $0x78] sm:$0xff] %v364
    // Predicated region
    $region18: #{tpu_custom_call.1} parent=1 // pred_check
      _
    $region19: #{tpu_custom_call.1} parent=1 // pred_check_branch
      %383 = sbr.rel (0) target = $region21
    $region20: #{tpu_custom_call.1} parent=1 // pred_region
      %385 = vsyncadd [#allocation4], 0
      %s386 = sshll.u32 [#allocation7], 4
      %s387 = int_to_ptr.vmem [resolvable:$true] %s386
      %s388 = sshll.u32 %s2, 4
      %s389 = int_to_ptr.hbm [resolvable:$true] %s388
      %394 = dma.vmem_to_hbm [thread:$0]  %s387, 2048, %s389, [#allocation4], 128, 128, 8
    $region21: #{tpu_custom_call.1} parent=1 // pred_fallthru
      _
    // Predicated region
    $region22: #{tpu_custom_call.1} parent=1 // pred_check
      _
    $region23: #{tpu_custom_call.1} parent=1 // pred_check_branch
      %396 = sbr.rel (0) target = $region25
    $region24: #{tpu_custom_call.1} parent=1 // pred_region
      %398 = dma.done [#allocation4], 2048
    $region25: #{tpu_custom_call.1} parent=1 // pred_fallthru
      _
    %399 = vsyncpa [#allocation3], 1
    %400 = vsyncpa [#allocation6], 1
    %401 = vsyncpa [#allocation4], 1

// kernel: tpu_custom_call.1
$region0: #{tpu_custom_call.1}
  #allocation0 [shape = 'u32[]', space=smem, size = 0x4, offset = 0x4, fixed_abs, tag = 'smem constant byte address 0x4 - core index']
  #allocation1 [shape = 'u32[72,128]{1,0:T(1,128)}', space=vmem, size = 0x9000, scoped, tag = 'internal scratch']
  %s0 = inlined_call_operand.hbm [shape: bf16[128,256], index: 0, kind: input, shape index: {}]
  %s1 = inlined_call_operand.hbm [shape: bf16[256,128], index: 1, kind: input, shape index: {}]
  %s2 = inlined_call_operand.hbm [shape: f32[128,128], index: 2, kind: output, shape index: {}]
  %s3 = sld [smem:[#allocation0]]
  $region26: #{tpu_custom_call.1} parent=0
    _
  %s5 = ssub.s32 1, %s3
  %s6 = scalar_select 0, %s5, %s3
  $region1: #{tpu_custom_call.1} parent=0
    #allocation2 [shape = 'u8[65536]{0}', space=vmem, size = 0x10000, scoped, tag = 'input window, operand 0, single buffered']
    #allocation3 [shape = 's32[1]{0}', space=sflag, size = 0x4, scoped, tag = 'scoped memory for tpu_custom_call.1']
    #allocation4 [shape = 's32[1]{0}', space=sflag, size = 0x4, scoped, tag = 'scoped memory for tpu_custom_call.1']
    #allocation5 [shape = 'u8[65536]{0}', space=vmem, size = 0x10000, scoped, tag = 'input window, operand 1, single buffered']
    #allocation6 [shape = 's32[1]{0}', space=sflag, size = 0x4, scoped, tag = 'scoped memory for tpu_custom_call.1']
    #allocation7 [shape = 'u8[65536]{0}', space=vmem, size = 0x10000, scoped, tag = 'output window, operand 0, single buffered']
    %7 = vsyncpa [#allocation3], 0
    %8 = vsyncpa [#allocation6], 0
    %9 = vsyncpa [#allocation4], 0
    // Predicated region
    $region2: #{tpu_custom_call.1} parent=1 // pred_check
      _
    $region3: #{tpu_custom_call.1} parent=1 // pred_check_branch
      %11 = sbr.rel (0) target = $region5
    $region4: #{tpu_custom_call.1} parent=1 // pred_region
      %13 = vsyncadd [#allocation3], 0
      %s14 = sshll.u32 %s0, 4
      %s15 = int_to_ptr.hbm [resolvable:$true] %s14
      %s16 = sshll.u32 [#allocation2], 4
      %s17 = int_to_ptr.vmem [resolvable:$true] %s16
      %22 = dma.hbm_to_vmem [thread:$0]  %s15, 2048, %s17, [#allocation3], 128, 128, 8
    $region5: #{tpu_custom_call.1} parent=1 // pred_fallthru
      _
    // Predicated region
    $region6: #{tpu_custom_call.1} parent=1 // pred_check
      _
    $region7: #{tpu_custom_call.1} parent=1 // pred_check_branch
      %24 = sbr.rel (0) target = $region9
    $region8: #{tpu_custom_call.1} parent=1 // pred_region
      %26 = vsyncadd [#allocation6], 0
      %s27 = sshll.u32 %s1, 4
      %s28 = int_to_ptr.hbm [resolvable:$true] %s27
      %s29 = sshll.u32 [#allocation5], 4
      %s30 = int_to_ptr.vmem [resolvable:$true] %s29
      %35 = dma.hbm_to_vmem [thread:$0]  %s28, 2048, %s30, [#allocation6], 64, 64, 4
    $region9: #{tpu_custom_call.1} parent=1 // pred_fallthru
      _
    // Predicated region
    $region10: #{tpu_custom_call.1} parent=1 // pred_check
      _
    $region11: #{tpu_custom_call.1} parent=1 // pred_check_branch
      %37 = sbr.rel (0) target = $region13
    $region12: #{tpu_custom_call.1} parent=1 // pred_region
      %39 = dma.done [#allocation3], 2048
    $region13: #{tpu_custom_call.1} parent=1 // pred_fallthru
      _
    // Predicated region
    $region14: #{tpu_custom_call.1} parent=1 // pred_check
      _
    $region15: #{tpu_custom_call.1} parent=1 // pred_check_branch
      %41 = sbr.rel (0) target = $region17
    $region16: #{tpu_custom_call.1} parent=1 // pred_region
      %43 = dma.done [#allocation6], 2048
    $region17: #{tpu_custom_call.1} parent=1 // pred_fallthru
      _
    %v44 = vld [vmem:[#allocation2] sm:$0xff]
    %v45 = vld [vmem:[#allocation2 + $0x8] sm:$0xff]
    %v46 = vld [vmem:[#allocation2 + $0x10] sm:$0xff]
    %v47 = vld [vmem:[#allocation2 + $0x18] sm:$0xff]
    %v48 = vld [vmem:[#allocation2 + $0x20] sm:$0xff]
    %v49 = vld [vmem:[#allocation2 + $0x28] sm:$0xff]
    %v50 = vld [vmem:[#allocation2 + $0x30] sm:$0xff]
    %v51 = vld [vmem:[#allocation2 + $0x38] sm:$0xff]
    %v52 = vld [vmem:[#allocation2 + $0x40] sm:$0xff]
    %v53 = vld [vmem:[#allocation2 + $0x48] sm:$0xff]
    %v54 = vld [vmem:[#allocation2 + $0x50] sm:$0xff]
    %v55 = vld [vmem:[#allocation2 + $0x58] sm:$0xff]
    %v56 = vld [vmem:[#allocation2 + $0x60] sm:$0xff]
    %v57 = vld [vmem:[#allocation2 + $0x68] sm:$0xff]
    %v58 = vld [vmem:[#allocation2 + $0x70] sm:$0xff]
    %v59 = vld [vmem:[#allocation2 + $0x78] sm:$0xff]
    %v60 = vld [vmem:[#allocation5] sm:$0xf]
    %v61 = vld [vmem:[#allocation5 + $0x4] sm:$0xf]
    %v62 = vld [vmem:[#allocation5 + $0x8] sm:$0xf]
    %v63 = vld [vmem:[#allocation5 + $0xc] sm:$0xf]
    %v64 = vld [vmem:[#allocation5 + $0x10] sm:$0xf]
    %v65 = vld [vmem:[#allocation5 + $0x14] sm:$0xf]
    %v66 = vld [vmem:[#allocation5 + $0x18] sm:$0xf]
    %v67 = vld [vmem:[#allocation5 + $0x1c] sm:$0xf]
    %v68 = vld [vmem:[#allocation5 + $0x20] sm:$0xf]
    %v69 = vld [vmem:[#allocation5 + $0x24] sm:$0xf]
    %v70 = vld [vmem:[#allocation5 + $0x28] sm:$0xf]
    %v71 = vld [vmem:[#allocation5 + $0x2c] sm:$0xf]
    %v72 = vld [vmem:[#allocation5 + $0x30] sm:$0xf]
    %v73 = vld [vmem:[#allocation5 + $0x34] sm:$0xf]
    %v74 = vld [vmem:[#allocation5 + $0x38] sm:$0xf]
    %v75 = vld [vmem:[#allocation5 + $0x3c] sm:$0xf]
    %v76 = vld [vmem:[#allocation5 + $0x40] sm:$0xf]
    %v77 = vld [vmem:[#allocation5 + $0x44] sm:$0xf]
    %v78 = vld [vmem:[#allocation5 + $0x48] sm:$0xf]
    %v79 = vld [vmem:[#allocation5 + $0x4c] sm:$0xf]
    %v80 = vld [vmem:[#allocation5 + $0x50] sm:$0xf]
    %v81 = vld [vmem:[#allocation5 + $0x54] sm:$0xf]
    %v82 = vld [vmem:[#allocation5 + $0x58] sm:$0xf]
    %v83 = vld [vmem:[#allocation5 + $0x5c] sm:$0xf]
    %v84 = vld [vmem:[#allocation5 + $0x60] sm:$0xf]
    %v85 = vld [vmem:[#allocation5 + $0x64] sm:$0xf]
    %v86 = vld [vmem:[#allocation5 + $0x68] sm:$0xf]
    %v87 = vld [vmem:[#allocation5 + $0x6c] sm:$0xf]
    %v88 = vld [vmem:[#allocation5 + $0x70] sm:$0xf]
    %v89 = vld [vmem:[#allocation5 + $0x74] sm:$0xf]
    %v90 = vld [vmem:[#allocation5 + $0x78] sm:$0xf]
    %v91 = vld [vmem:[#allocation5 + $0x7c] sm:$0xf]
    %v108 = vunpack.c.l.b16 %v44
    %v109 = vunpack.c.h.b16 %v44
    %v110 = vunpack.c.l.b16 %v45
    %v111 = vunpack.c.h.b16 %v45
    %v112 = vunpack.c.l.b16 %v46
    %v113 = vunpack.c.h.b16 %v46
    %v114 = vunpack.c.l.b16 %v47
    %v115 = vunpack.c.h.b16 %v47
    %v116 = vunpack.c.l.b16 %v48
    %v117 = vunpack.c.h.b16 %v48
    %v118 = vunpack.c.l.b16 %v49
    %v119 = vunpack.c.h.b16 %v49
    %v120 = vunpack.c.l.b16 %v50
    %v121 = vunpack.c.h.b16 %v50
    %v122 = vunpack.c.l.b16 %v51
    %v123 = vunpack.c.h.b16 %v51
    %v124 = vunpack.c.l.b16 %v52
    %v125 = vunpack.c.h.b16 %v52
    %v126 = vunpack.c.l.b16 %v53
    %v127 = vunpack.c.h.b16 %v53
    %v128 = vunpack.c.l.b16 %v54
    %v129 = vunpack.c.h.b16 %v54
    %v130 = vunpack.c.l.b16 %v55
    %v131 = vunpack.c.h.b16 %v55
    %v132 = vunpack.c.l.b16 %v56
    %v133 = vunpack.c.h.b16 %v56
    %v134 = vunpack.c.l.b16 %v57
    %v135 = vunpack.c.h.b16 %v57
    %v136 = vunpack.c.l.b16 %v58
    %v137 = vunpack.c.h.b16 %v58
    %v138 = vunpack.c.l.b16 %v59
    %v139 = vunpack.c.h.b16 %v59
    %v140 = vpack.c.b16 %v110, %v108
    %v141 = vpack.c.b16 %v111, %v109
    %v142 = vpack.c.b16 %v114, %v112
    %v143 = vpack.c.b16 %v115, %v113
    %v144 = vpack.c.b16 %v118, %v116
    %v145 = vpack.c.b16 %v119, %v117
    %v146 = vpack.c.b16 %v122, %v120
    %v147 = vpack.c.b16 %v123, %v121
    %v148 = vpack.c.b16 %v126, %v124
    %v149 = vpack.c.b16 %v127, %v125
    %v150 = vpack.c.b16 %v130, %v128
    %v151 = vpack.c.b16 %v131, %v129
    %v152 = vpack.c.b16 %v134, %v132
    %v153 = vpack.c.b16 %v135, %v133
    %v154 = vpack.c.b16 %v138, %v136
    %v155 = vpack.c.b16 %v139, %v137
    %v204 = vunpack.c.l.b16 %v60
    %v205 = vunpack.c.l.b16 %v61
    %v206 = vunpack.c.l.b16 %v62
    %v207 = vunpack.c.l.b16 %v63
    %v208 = vunpack.c.l.b16 %v64
    %v209 = vunpack.c.l.b16 %v65
    %v210 = vunpack.c.l.b16 %v66
    %v211 = vunpack.c.l.b16 %v67
    %v212 = vunpack.c.l.b16 %v68
    %v213 = vunpack.c.l.b16 %v69
    %v214 = vunpack.c.l.b16 %v70
    %v215 = vunpack.c.l.b16 %v71
    %v216 = vunpack.c.l.b16 %v72
    %v217 = vunpack.c.l.b16 %v73
    %v218 = vunpack.c.l.b16 %v74
    %v219 = vunpack.c.l.b16 %v75
    %v220 = vunpack.c.l.b16 %v76
    %v221 = vunpack.c.l.b16 %v77
    %v222 = vunpack.c.l.b16 %v78
    %v223 = vunpack.c.l.b16 %v79
    %v224 = vunpack.c.l.b16 %v80
    %v225 = vunpack.c.l.b16 %v81
    %v226 = vunpack.c.l.b16 %v82
    %v227 = vunpack.c.l.b16 %v83
    %v228 = vunpack.c.l.b16 %v84
    %v229 = vunpack.c.l.b16 %v85
    %v230 = vunpack.c.l.b16 %v86
    %v231 = vunpack.c.l.b16 %v87
    %v232 = vunpack.c.l.b16 %v88
    %v233 = vunpack.c.l.b16 %v89
    %v234 = vunpack.c.l.b16 %v90
    %v235 = vunpack.c.l.b16 %v91
    %v236 = vpack.c.b16 %v205, %v204
    %v237 = vpack.c.b16 %v207, %v206
    %v238 = vpack.c.b16 %v209, %v208
    %v239 = vpack.c.b16 %v211, %v210
    %v240 = vpack.c.b16 %v213, %v212
    %v241 = vpack.c.b16 %v215, %v214
    %v242 = vpack.c.b16 %v217, %v216
    %v243 = vpack.c.b16 %v219, %v218
    %v244 = vpack.c.b16 %v221, %v220
    %v245 = vpack.c.b16 %v223, %v222
    %v246 = vpack.c.b16 %v225, %v224
    %v247 = vpack.c.b16 %v227, %v226
    %v248 = vpack.c.b16 %v229, %v228
    %v249 = vpack.c.b16 %v231, %v230
    %v250 = vpack.c.b16 %v233, %v232
    %v251 = vpack.c.b16 %v235, %v234
    %268 = vmatpush.bf16.msra.mxu0 %v243
    %269 = vmatpush.bf16.msra.mxu0 %v242
    %270 = vmatpush.bf16.msra.mxu0 %v241
    %271 = vmatpush.bf16.msra.mxu0 %v240
    %272 = vmatpush.bf16.msra.mxu0 %v239
    %273 = vmatpush.bf16.msra.mxu0 %v238
    %274 = vmatpush.bf16.msra.mxu0 %v237
    %275 = vmatpush.bf16.msra.mxu0 %v236
    %276 = vmatmul.bf16.gmra.mxu0 %v140
    %v277 = vpop.f32.mrf.mxu0
    %v278 = vadd.f32 0.0, %v277
    %v279 = vpop.f32.mrf.mxu0
    %v280 = vadd.f32 0.0, %v279
    %281 = vmatmul.bf16.gmra.mxu0 %v142
    %v282 = vpop.f32.mrf.mxu0
    %v283 = vadd.f32 0.0, %v282
    %v284 = vpop.f32.mrf.mxu0
    %v285 = vadd.f32 0.0, %v284
    %286 = vmatmul.bf16.gmra.mxu0 %v144
    %v287 = vpop.f32.mrf.mxu0
    %v288 = vadd.f32 0.0, %v287
    %v289 = vpop.f32.mrf.mxu0
    %v290 = vadd.f32 0.0, %v289
    %291 = vmatmul.bf16.gmra.mxu0 %v146
    %v292 = vpop.f32.mrf.mxu0
    %v293 = vadd.f32 0.0, %v292
    %v294 = vpop.f32.mrf.mxu0
    %v295 = vadd.f32 0.0, %v294
    %296 = vmatmul.bf16.gmra.mxu0 %v148
    %v297 = vpop.f32.mrf.mxu0
    %v298 = vadd.f32 0.0, %v297
    %v299 = vpop.f32.mrf.mxu0
    %v300 = vadd.f32 0.0, %v299
    %301 = vmatmul.bf16.gmra.mxu0 %v150
    %v302 = vpop.f32.mrf.mxu0
    %v303 = vadd.f32 0.0, %v302
    %v304 = vpop.f32.mrf.mxu0
    %v305 = vadd.f32 0.0, %v304
    %306 = vmatmul.bf16.gmra.mxu0 %v152
    %v307 = vpop.f32.mrf.mxu0
    %v308 = vadd.f32 0.0, %v307
    %v309 = vpop.f32.mrf.mxu0
    %v310 = vadd.f32 0.0, %v309
    %311 = vmatmul.bf16.gmra.mxu0 %v154
    %v312 = vpop.f32.mrf.mxu0
    %v313 = vadd.f32 0.0, %v312
    %v314 = vpop.f32.mrf.mxu0
    %v315 = vadd.f32 0.0, %v314
    %316 = vdwg.mxu0
    %317 = vmatpush.bf16.msra.mxu0 %v251
    %318 = vmatpush.bf16.msra.mxu0 %v250
    %319 = vmatpush.bf16.msra.mxu0 %v249
    %320 = vmatpush.bf16.msra.mxu0 %v248
    %321 = vmatpush.bf16.msra.mxu0 %v247
    %322 = vmatpush.bf16.msra.mxu0 %v246
    %323 = vmatpush.bf16.msra.mxu0 %v245
    %324 = vmatpush.bf16.msra.mxu0 %v244
    %325 = vmatmul.bf16.gmra.mxu0 %v141
    %v326 = vpop.f32.mrf.mxu0
    %v327 = vadd.f32 %v278, %v326
    %v328 = vpop.f32.mrf.mxu0
    %v329 = vadd.f32 %v280, %v328
    %330 = vmatmul.bf16.gmra.mxu0 %v143
    %v331 = vpop.f32.mrf.mxu0
    %v332 = vadd.f32 %v283, %v331
    %v333 = vpop.f32.mrf.mxu0
    %v334 = vadd.f32 %v285, %v333
    %335 = vmatmul.bf16.gmra.mxu0 %v145
    %v336 = vpop.f32.mrf.mxu0
    %v337 = vadd.f32 %v288, %v336
    %v338 = vpop.f32.mrf.mxu0
    %v339 = vadd.f32 %v290, %v338
    %340 = vmatmul.bf16.gmra.mxu0 %v147
    %v341 = vpop.f32.mrf.mxu0
    %v342 = vadd.f32 %v293, %v341
    %v343 = vpop.f32.mrf.mxu0
    %v344 = vadd.f32 %v295, %v343
    %345 = vmatmul.bf16.gmra.mxu0 %v149
    %v346 = vpop.f32.mrf.mxu0
    %v347 = vadd.f32 %v298, %v346
    %v348 = vpop.f32.mrf.mxu0
    %v349 = vadd.f32 %v300, %v348
    %350 = vmatmul.bf16.gmra.mxu0 %v151
    %v351 = vpop.f32.mrf.mxu0
    %v352 = vadd.f32 %v303, %v351
    %v353 = vpop.f32.mrf.mxu0
    %v354 = vadd.f32 %v305, %v353
    %355 = vmatmul.bf16.gmra.mxu0 %v153
    %v356 = vpop.f32.mrf.mxu0
    %v357 = vadd.f32 %v308, %v356
    %v358 = vpop.f32.mrf.mxu0
    %v359 = vadd.f32 %v310, %v358
    %360 = vmatmul.bf16.gmra.mxu0 %v155
    %v361 = vpop.f32.mrf.mxu0
    %v362 = vadd.f32 %v313, %v361
    %v363 = vpop.f32.mrf.mxu0
    %v364 = vadd.f32 %v315, %v363
    %365 = vdwg.mxu0
    %366 = vst [vmem:[#allocation7] sm:$0xff] %v327
    %367 = vst [vmem:[#allocation7 + $0x8] sm:$0xff] %v329
    %368 = vst [vmem:[#allocation7 + $0x10] sm:$0xff] %v332
    %369 = vst [vmem:[#allocation7 + $0x18] sm:$0xff] %v334
    %370 = vst [vmem:[#allocation7 + $0x20] sm:$0xff] %v337
    %371 = vst [vmem:[#allocation7 + $0x28] sm:$0xff] %v339
    %372 = vst [vmem:[#allocation7 + $0x30] sm:$0xff] %v342
    %373 = vst [vmem:[#allocation7 + $0x38] sm:$0xff] %v344
    %374 = vst [vmem:[#allocation7 + $0x40] sm:$0xff] %v347
    %375 = vst [vmem:[#allocation7 + $0x48] sm:$0xff] %v349
    %376 = vst [vmem:[#allocation7 + $0x50] sm:$0xff] %v352
    %377 = vst [vmem:[#allocation7 + $0x58] sm:$0xff] %v354
    %378 = vst [vmem:[#allocation7 + $0x60] sm:$0xff] %v357
    %379 = vst [vmem:[#allocation7 + $0x68] sm:$0xff] %v359
    %380 = vst [vmem:[#allocation7 + $0x70] sm:$0xff] %v362
    %381 = vst [vmem:[#allocation7 + $0x78] sm:$0xff] %v364
    // Predicated region
    $region18: #{tpu_custom_call.1} parent=1 // pred_check
      _
    $region19: #{tpu_custom_call.1} parent=1 // pred_check_branch
      %383 = sbr.rel (0) target = $region21
    $region20: #{tpu_custom_call.1} parent=1 // pred_region
      %385 = vsyncadd [#allocation4], 0
      %s386 = sshll.u32 [#allocation7], 4
      %s387 = int_to_ptr.vmem [resolvable:$true] %s386
      %s388 = sshll.u32 %s2, 4
      %s389 = int_to_ptr.hbm [resolvable:$true] %s388
      %394 = dma.vmem_to_hbm [thread:$0]  %s387, 2048, %s389, [#allocation4], 128, 128, 8
    $region21: #{tpu_custom_call.1} parent=1 // pred_fallthru
      _
    // Predicated region
    $region22: #{tpu_custom_call.1} parent=1 // pred_check
      _
    $region23: #{tpu_custom_call.1} parent=1 // pred_check_branch
      %396 = sbr.rel (0) target = $region25
    $region24: #{tpu_custom_call.1} parent=1 // pred_region
      %398 = dma.done [#allocation4], 2048
    $region25: #{tpu_custom_call.1} parent=1 // pred_fallthru
      _
    %399 = vsyncpa [#allocation3], 1
    %400 = vsyncpa [#allocation6], 1
    %401 = vsyncpa [#allocation4], 1

</llo_original>
